<compile_context>
chip_gen: v5e
topology: v5e:2x2
jax: 0.10.0
libtpu: 0.0.40
codegen_flags: <defaults>
</compile_context>

<pallas_src>
import functools

import jax
import jax.numpy as jnp
import numpy as np
from jax import lax
from jax.experimental import pallas as pl
from jax.experimental.pallas import tpu as pltpu


def _bt_kernel(z1_ref, z2_ref, loss_ref, g1_ref, g2_ref, dod_ref, dd2_ref, *,
               n_true, row_block, lambd, scale_factor):
    r = pl.program_id(0)              # gram row block (parallel axis)
    k = pl.program_id(1)              # feature chunk (reduction axis)
    nk = pl.num_programs(1)

    @pl.when(k == 0)
    def _init():
        g1_ref[...] = jnp.zeros_like(g1_ref)
        g2_ref[...] = jnp.zeros_like(g2_ref)
        dod_ref[...] = jnp.zeros_like(dod_ref)
        dd2_ref[...] = jnp.zeros_like(dd2_ref)

    z1 = z1_ref[...]                  # (N_pad, tile_d), native dtype
    z2 = z2_ref[...]

    if row_block == z1_ref.shape[0]:  # single row block: no slicing needed
        z1_rows, z2_rows = z1, z2
    else:
        row0 = pl.multiple_of(r * row_block, row_block)
        z1_rows = z1_ref[pl.ds(row0, row_block), :]
        z2_rows = z2_ref[pl.ds(row0, row_block), :]

    # Row block of the N x N gram matrices; contraction over the feature chunk
    # (K = tile_d, the large dim) -> good MXU utilization.
    # NOTE: contracting dim 1 of both operands is the A @ A^T form; if profiling
    # shows an XLU-bound per-step transpose for small N, feed a pre-transposed
    # (tile_d, N) operand instead (verify with pl.lower_as_mlir).
    dims = (((1,), (1,)), ((), ()))
    g1_ref[...] += lax.dot_general(z1_rows, z1, dims,
                                   preferred_element_type=jnp.float32)
    g2_ref[...] += lax.dot_general(z2_rows, z2, dims,
                                   preferred_element_type=jnp.float32)

    # diag(c) for this feature chunk, owned by row block 0 (counted once).
    # Accumulated into (1,128) lane vectors; cross-lane reduce deferred to end.
    @pl.when(r == 0)
    def _diag():
        prod = z1.astype(jnp.float32) * z2.astype(jnp.float32)     # (N_pad, tile_d)
        diag = jnp.sum(prod, axis=0, keepdims=True) * (1.0 / n_true)
        tl = diag.shape[1]
        od = (diag - 1.0) ** 2
        d2 = diag * diag
        dod_ref[...] += jnp.sum(od.reshape(tl // 128, 128), axis=0, keepdims=True)
        dd2_ref[...] += jnp.sum(d2.reshape(tl // 128, 128), axis=0, keepdims=True)

    @pl.when(k == nk - 1)
    def _finalize():
        # <G1_r, G2_r> partials over gram row blocks are exactly additive.
        frob = jnp.sum(g1_ref[...] * g2_ref[...]) * (1.0 / (n_true * n_true))
        on_diag = jnp.sum(dod_ref[...])     # zero for r != 0
        sum_d2 = jnp.sum(dd2_ref[...])      # zero for r != 0
        partial = scale_factor * (lambd * frob + on_diag - lambd * sum_d2)
        loss_ref[...] = jnp.broadcast_to(partial, loss_ref.shape).astype(jnp.float32)


def _round_up(x, m):
    return (x + m - 1) // m * m


def _vmem_capacity_bytes():
    try:
        return int(pltpu.get_tpu_info().vmem_capacity_bytes)
    except Exception:
        return 64 * 1024 * 1024           # conservative (v7x per-TC VMEM)


def _num_tensorcores():
    try:
        info = pltpu.get_tpu_info()
        for attr in ("num_cores", "core_count", "num_tensorcores",
                     "tensorcores_per_chip"):
            v = getattr(info, attr, None)
            if v:
                return int(v)
    except Exception:
        pass
    try:
        return int(getattr(jax.devices()[0], "num_cores", 1) or 1)
    except Exception:
        return 1


def _plan(n_pad, d_pad, itemsize, requested_row_blocks):
    """Pick (num_row_blocks, tile_d, vmem_limit_bytes) from shape/dtype/VMEM."""
    cap = _vmem_capacity_bytes()
    budget = int(cap * 0.75)

    def need_bytes(rb, t):
        gram = 2 * (n_pad // rb) * n_pad * 4        # two f32 gram row-block accs
        inputs = 2 * 2 * n_pad * t * itemsize       # two inputs, double-buffered
        temps = 4 * n_pad * t                       # f32 diag-product temporary
        return gram + inputs + temps

    if requested_row_blocks is None:
        rb = 2 if _num_tensorcores() >= 2 else 1    # megacore (v7x) row split
    else:
        rb = max(1, int(requested_row_blocks))
    while rb > 1 and (n_pad % rb != 0 or (n_pad // rb) % 8 != 0):
        rb -= 1
    # Large-N fallback: grow the row split until the gram scratch fits VMEM.
    while (need_bytes(rb, 128) + (2 << 20) > budget and rb * 2 <= n_pad // 8
           and n_pad % (rb * 2) == 0 and (n_pad // (rb * 2)) % 8 == 0):
        rb *= 2
    # TODO(synk): for N so large that even (N/rb, N) gram row blocks exceed
    # VMEM, fall back to direct D x D tiling of c instead of the gram identity.

    cands = sorted({t for t in (d_pad, 4096, 2048, 1024, 512, 256, 128)
                    if 0 < t <= d_pad and d_pad % t == 0}, reverse=True)
    tile_d = cands[-1]                              # smallest (=128) fallback
    for t in cands:
        if need_bytes(rb, t) + (2 << 20) <= budget:
            tile_d = t
            break

    vmem_limit = int(min(cap, max(32 << 20, need_bytes(rb, tile_d) + (8 << 20))))
    return rb, tile_d, vmem_limit


def barlow_twins_loss(z1, z2, *, scale_factor=1.0, lambd=0.5,
                      num_row_blocks=None, tile_d=None):
    """Pallas TPU implementation of BarlowTwinsLoss.forward(z1, z2)."""
    assert z1.shape == z2.shape and z1.ndim == 2
    assert z1.dtype == z2.dtype
    n, d = z1.shape
    n_pad = _round_up(n, 128)         # lane-dense gram stores (last dim = N_pad)
    d_pad = _round_up(d, 128)         # unmasked, pipelined feature tiles
    itemsize = jnp.dtype(z1.dtype).itemsize

    rb, auto_tile_d, vmem_limit = _plan(n_pad, d_pad, itemsize, num_row_blocks)
    if tile_d is None:
        tile_d = auto_tile_d
    assert d_pad % tile_d == 0 and tile_d % 128 == 0
    row_block = n_pad // rb
    num_chunks = d_pad // tile_d

    if (n_pad, d_pad) != (n, d):
        pad = ((0, n_pad - n), (0, d_pad - d))
        z1 = jnp.pad(z1, pad)
        z2 = jnp.pad(z2, pad)

    kernel = functools.partial(
        _bt_kernel, n_true=float(n), row_block=row_block,
        lambd=float(lambd), scale_factor=float(scale_factor))

    cost = pl.CostEstimate(
        flops=4 * n_pad * n_pad * d_pad + 3 * n_pad * d_pad,
        transcendentals=0,
        bytes_accessed=rb * 2 * n_pad * d_pad * itemsize + rb * 8 * 128 * 4)

    out = pl.pallas_call(
        kernel,
        out_shape=jax.ShapeDtypeStruct((rb, 8, 128), jnp.float32),
        grid_spec=pltpu.PrefetchScalarGridSpec(
            num_scalar_prefetch=0,
            grid=(rb, num_chunks),
            in_specs=[
                pl.BlockSpec((n_pad, tile_d), lambda r, k: (0, k)),
                pl.BlockSpec((n_pad, tile_d), lambda r, k: (0, k)),
            ],
            out_specs=pl.BlockSpec((1, 8, 128), lambda r, k: (r, 0, 0)),
            scratch_shapes=[
                pltpu.VMEM((row_block, n_pad), jnp.float32),   # z1 z1^T row block
                pltpu.VMEM((row_block, n_pad), jnp.float32),   # z2 z2^T row block
                pltpu.VMEM((1, 128), jnp.float32),             # sum (diag-1)^2 lanes
                pltpu.VMEM((1, 128), jnp.float32),             # sum diag^2 lanes
            ]),
        compiler_params=pltpu.CompilerParams(
            dimension_semantics=("parallel", "arbitrary"),
            vmem_limit_bytes=vmem_limit),
        cost_estimate=cost,
    )(z1, z2)

    # Each zero-padded feature column contributed exactly +1.0 to on_diag.
    pad_correction = float(scale_factor) * float(d_pad - d)
    return jnp.sum(out[:, 0, 0]) - jnp.float32(pad_correction)


def _reference_loss(z1, z2, scale_factor=1.0, lambd=0.5):
    # Host float64 reference mirroring the PyTorch module.
    a = np.asarray(z1).astype(np.float64)
    b = np.asarray(z2).astype(np.float64)
    c = (a.T @ b) / a.shape[0]
    diag = np.diagonal(c)
    on_diag = np.sum((diag - 1.0) ** 2)
    off_diag = np.sum(c ** 2) - np.sum(diag ** 2)
    return scale_factor * (on_diag + lambd * off_diag)


if __name__ == "__main__":
    key = jax.random.PRNGKey(0)
    k1, k2, k3, k4, k5, k6, k7, k8 = jax.random.split(key, 8)

    # Case 1: tiny shape; exercises N/D zero-padding (8->128, 32->128).
    z1 = jax.random.normal(k1, (8, 32), dtype=jnp.float32)
    z2 = jax.random.normal(k2, (8, 32), dtype=jnp.float32)
    loss = jax.block_until_ready(
        barlow_twins_loss(z1, z2, scale_factor=1.0, lambd=0.5))
    ref = _reference_loss(z1, z2, 1.0, 0.5)
    assert np.allclose(np.asarray(loss), ref, rtol=1e-3, atol=1e-3), (loss, ref)

    # Case 2: forced feature chunking (tile_d=128) plus an explicit 2-way gram
    # row split (the v7x megacore path, run sequentially on 1-TC chips), with
    # real rows landing in both row blocks and ragged N/D padding.
    w1 = jax.random.normal(k3, (300, 160), dtype=jnp.float32)
    w2 = jax.random.normal(k4, (300, 160), dtype=jnp.float32)
    loss2 = jax.block_until_ready(
        barlow_twins_loss(w1, w2, scale_factor=2.0, lambd=0.3,
                          num_row_blocks=2, tile_d=128))
    ref2 = _reference_loss(w1, w2, 2.0, 0.3)
    assert np.allclose(np.asarray(loss2), ref2, rtol=1e-3, atol=1e-2), (loss2, ref2)

    # Case 3: ragged N and D (neither aligned) -> zero-pad + on_diag correction.
    v1 = jax.random.normal(k5, (20, 100), dtype=jnp.float32)
    v2 = jax.random.normal(k6, (20, 100), dtype=jnp.float32)
    loss3 = jax.block_until_ready(
        barlow_twins_loss(v1, v2, scale_factor=1.5, lambd=0.7))
    ref3 = _reference_loss(v1, v2, 1.5, 0.7)
    assert np.allclose(np.asarray(loss3), ref3, rtol=1e-3, atol=1e-2), (loss3, ref3)

    # Case 4: bf16 inputs stay in native dtype for the MXU; f32 accumulation.
    b1 = jax.random.normal(k7, (16, 128), dtype=jnp.bfloat16)
    b2 = jax.random.normal(k8, (16, 128), dtype=jnp.bfloat16)
    loss4 = jax.block_until_ready(barlow_twins_loss(b1, b2))
    ref4 = _reference_loss(b1, b2, 1.0, 0.5)
    assert np.allclose(np.asarray(loss4), ref4, rtol=2e-3, atol=2e-2), (loss4, ref4)

    print("KERNEL_OK")
</pallas_src>

<mosaic_0001>
module attributes {stable_mosaic.version = 11 : i64} {
  func.func @_bt_kernel(%arg0: i32, %arg1: i32, %arg2: memref<128x128xf32, #tpu.memory_space<vmem>>, %arg3: memref<128x128xf32, #tpu.memory_space<vmem>>, %arg4: memref<1x8x128xf32, #tpu.memory_space<vmem>>, %arg5: memref<128x128xf32, #tpu.memory_space<vmem>>, %arg6: memref<128x128xf32, #tpu.memory_space<vmem>>, %arg7: memref<1x128xf32, #tpu.memory_space<vmem>>, %arg8: memref<1x128xf32, #tpu.memory_space<vmem>>) attributes {dimension_semantics = [#tpu.dimension_semantics<parallel>, #tpu.dimension_semantics<arbitrary>], iteration_bounds = array<i64: 1, 1>, scalar_prefetch = 0 : i64, scratch_operands = 4 : i64, tpu.core_type = #tpu.core_type<tc>, window_params = [{transform_indices = @transform_0, window_bounds = array<i64: 128, 128>}, {transform_indices = @transform_1, window_bounds = array<i64: 128, 128>}, {transform_indices = @transform_2, window_bounds = array<i64: 1, 8, 128>}]} {
    %c0_i32 = arith.constant 0 : i32
    %0 = arith.cmpi eq, %arg1, %c0_i32 : i32
    %1 = arith.extui %0 : i1 to i32
    %c0_i32_0 = arith.constant 0 : i32
    %2 = arith.cmpi ne, %1, %c0_i32_0 : i32
    scf.if %2 {
      %cst_17 = arith.constant 0.000000e+00 : f32
      %19 = vector.broadcast %cst_17 : f32 to vector<128x128xf32>
      %c0_18 = arith.constant 0 : index
      %c0_19 = arith.constant 0 : index
      %20 = vector.load %arg5[%c0_18, %c0_19] : memref<128x128xf32, #tpu.memory_space<vmem>>, vector<128x128xf32>
      tpu.vector_store %arg5[%c0_18, %c0_19], %19 {strides = array<i32>} : memref<128x128xf32, #tpu.memory_space<vmem>>, vector<128x128xf32>,
      %cst_20 = arith.constant 0.000000e+00 : f32
      %21 = vector.broadcast %cst_20 : f32 to vector<128x128xf32>
      %c0_21 = arith.constant 0 : index
      %c0_22 = arith.constant 0 : index
      %22 = vector.load %arg6[%c0_21, %c0_22] : memref<128x128xf32, #tpu.memory_space<vmem>>, vector<128x128xf32>
      tpu.vector_store %arg6[%c0_21, %c0_22], %21 {strides = array<i32>} : memref<128x128xf32, #tpu.memory_space<vmem>>, vector<128x128xf32>,
      %cst_23 = arith.constant 0.000000e+00 : f32
      %23 = vector.broadcast %cst_23 : f32 to vector<1x128xf32>
      %c0_24 = arith.constant 0 : index
      %c0_25 = arith.constant 0 : index
      %24 = vector.load %arg7[%c0_24, %c0_25] : memref<1x128xf32, #tpu.memory_space<vmem>>, vector<1x128xf32>
      tpu.vector_store %arg7[%c0_24, %c0_25], %23 {strides = array<i32>} : memref<1x128xf32, #tpu.memory_space<vmem>>, vector<1x128xf32>,
      %cst_26 = arith.constant 0.000000e+00 : f32
      %25 = vector.broadcast %cst_26 : f32 to vector<1x128xf32>
      %c0_27 = arith.constant 0 : index
      %c0_28 = arith.constant 0 : index
      %26 = vector.load %arg8[%c0_27, %c0_28] : memref<1x128xf32, #tpu.memory_space<vmem>>, vector<1x128xf32>
      tpu.vector_store %arg8[%c0_27, %c0_28], %25 {strides = array<i32>} : memref<1x128xf32, #tpu.memory_space<vmem>>, vector<1x128xf32>,
    } else {
    }
    %c0 = arith.constant 0 : index
    %c0_1 = arith.constant 0 : index
    %3 = vector.load %arg2[%c0, %c0_1] : memref<128x128xf32, #tpu.memory_space<vmem>>, vector<128x128xf32>
    %c0_2 = arith.constant 0 : index
    %c0_3 = arith.constant 0 : index
    %4 = vector.load %arg3[%c0_2, %c0_3] : memref<128x128xf32, #tpu.memory_space<vmem>>, vector<128x128xf32>
    %c0_4 = arith.constant 0 : index
    %c0_5 = arith.constant 0 : index
    %5 = vector.load %arg5[%c0_4, %c0_5] : memref<128x128xf32, #tpu.memory_space<vmem>>, vector<128x128xf32>
    %cst = arith.constant dense<0.000000e+00> : vector<128x128xf32>
    %6 = tpu.matmul %3, %3, %cst {dimension_numbers = #tpu.dot_dimension_numbers<[1], [1], [0], [0], [0, 0, 1, 0], [], []>} : vector<128x128xf32>, vector<128x128xf32>, vector<128x128xf32> -> vector<128x128xf32>
    %7 = arith.addf %5, %6 : vector<128x128xf32>
    %c0_6 = arith.constant 0 : index
    %c0_7 = arith.constant 0 : index
    %8 = vector.load %arg5[%c0_6, %c0_7] : memref<128x128xf32, #tpu.memory_space<vmem>>, vector<128x128xf32>
    tpu.vector_store %arg5[%c0_6, %c0_7], %7 {strides = array<i32>} : memref<128x128xf32, #tpu.memory_space<vmem>>, vector<128x128xf32>,
    %c0_8 = arith.constant 0 : index
    %c0_9 = arith.constant 0 : index
    %9 = vector.load %arg6[%c0_8, %c0_9] : memref<128x128xf32, #tpu.memory_space<vmem>>, vector<128x128xf32>
    %cst_10 = arith.constant dense<0.000000e+00> : vector<128x128xf32>
    %10 = tpu.matmul %4, %4, %cst_10 {dimension_numbers = #tpu.dot_dimension_numbers<[1], [1], [0], [0], [0, 0, 1, 0], [], []>} : vector<128x128xf32>, vector<128x128xf32>, vector<128x128xf32> -> vector<128x128xf32>
    %11 = arith.addf %9, %10 : vector<128x128xf32>
    %c0_11 = arith.constant 0 : index
    %c0_12 = arith.constant 0 : index
    %12 = vector.load %arg6[%c0_11, %c0_12] : memref<128x128xf32, #tpu.memory_space<vmem>>, vector<128x128xf32>
    tpu.vector_store %arg6[%c0_11, %c0_12], %11 {strides = array<i32>} : memref<128x128xf32, #tpu.memory_space<vmem>>, vector<128x128xf32>,
    %c0_i32_13 = arith.constant 0 : i32
    %13 = arith.cmpi eq, %arg0, %c0_i32_13 : i32
    %14 = arith.extui %13 : i1 to i32
    %c0_i32_14 = arith.constant 0 : i32
    %15 = arith.cmpi ne, %14, %c0_i32_14 : i32
    scf.if %15 {
      %19 = arith.mulf %3, %4 : vector<128x128xf32>
      %cst_17 = arith.constant dense<0.000000e+00> : vector<128xf32>
      %20 = vector.multi_reduction <add>, %19, %cst_17 [0] : vector<128x128xf32> to vector<128xf32>
      %21 = vector.shape_cast %20 : vector<128xf32> to vector<1x128xf32>
      %cst_18 = arith.constant 1.250000e-01 : f32
      %22 = vector.broadcast %cst_18 : f32 to vector<1x128xf32>
      %23 = arith.mulf %21, %22 : vector<1x128xf32>
      %cst_19 = arith.constant 1.000000e+00 : f32
      %24 = vector.broadcast %cst_19 : f32 to vector<1x128xf32>
      %25 = arith.subf %23, %24 : vector<1x128xf32>
      %26 = arith.mulf %25, %25 : vector<1x128xf32>
      %27 = arith.mulf %23, %23 : vector<1x128xf32>
      %c0_20 = arith.constant 0 : index
      %c0_21 = arith.constant 0 : index
      %28 = vector.load %arg7[%c0_20, %c0_21] : memref<1x128xf32, #tpu.memory_space<vmem>>, vector<1x128xf32>
      %cst_22 = arith.constant dense<0.000000e+00> : vector<128xf32>
      %29 = vector.multi_reduction <add>, %26, %cst_22 [0] : vector<1x128xf32> to vector<128xf32>
      %30 = vector.shape_cast %29 : vector<128xf32> to vector<1x128xf32>
      %31 = arith.addf %28, %30 : vector<1x128xf32>
      %c0_23 = arith.constant 0 : index
      %c0_24 = arith.constant 0 : index
      %32 = vector.load %arg7[%c0_23, %c0_24] : memref<1x128xf32, #tpu.memory_space<vmem>>, vector<1x128xf32>
      tpu.vector_store %arg7[%c0_23, %c0_24], %31 {strides = array<i32>} : memref<1x128xf32, #tpu.memory_space<vmem>>, vector<1x128xf32>,
      %c0_25 = arith.constant 0 : index
      %c0_26 = arith.constant 0 : index
      %33 = vector.load %arg8[%c0_25, %c0_26] : memref<1x128xf32, #tpu.memory_space<vmem>>, vector<1x128xf32>
      %cst_27 = arith.constant dense<0.000000e+00> : vector<128xf32>
      %34 = vector.multi_reduction <add>, %27, %cst_27 [0] : vector<1x128xf32> to vector<128xf32>
      %35 = vector.shape_cast %34 : vector<128xf32> to vector<1x128xf32>
      %36 = arith.addf %33, %35 : vector<1x128xf32>
      %c0_28 = arith.constant 0 : index
      %c0_29 = arith.constant 0 : index
      %37 = vector.load %arg8[%c0_28, %c0_29] : memref<1x128xf32, #tpu.memory_space<vmem>>, vector<1x128xf32>
      tpu.vector_store %arg8[%c0_28, %c0_29], %36 {strides = array<i32>} : memref<1x128xf32, #tpu.memory_space<vmem>>, vector<1x128xf32>,
    } else {
    }
    %c0_i32_15 = arith.constant 0 : i32
    %16 = arith.cmpi eq, %arg1, %c0_i32_15 : i32
    %17 = arith.extui %16 : i1 to i32
    %c0_i32_16 = arith.constant 0 : i32
    %18 = arith.cmpi ne, %17, %c0_i32_16 : i32
    scf.if %18 {
      %c0_17 = arith.constant 0 : index
      %c0_18 = arith.constant 0 : index
      %19 = vector.load %arg5[%c0_17, %c0_18] : memref<128x128xf32, #tpu.memory_space<vmem>>, vector<128x128xf32>
      %c0_19 = arith.constant 0 : index
      %c0_20 = arith.constant 0 : index
      %20 = vector.load %arg6[%c0_19, %c0_20] : memref<128x128xf32, #tpu.memory_space<vmem>>, vector<128x128xf32>
      %21 = arith.mulf %19, %20 : vector<128x128xf32>
      %22 = vector.shape_cast %21 : vector<128x128xf32> to vector<1x128x128xf32>
      %cst_21 = arith.constant dense<0.000000e+00> : vector<1xf32>
      %23 = vector.multi_reduction <add>, %22, %cst_21 [1, 2] : vector<1x128x128xf32> to vector<1xf32>
      %24 = vector.shape_cast %23 : vector<1xf32> to vector<1x1x1xf32>
      %25 = vector.extract %24[0, 0, 0] : f32 from vector<1x1x1xf32>
      %cst_22 = arith.constant 1.562500e-02 : f32
      %26 = arith.mulf %25, %cst_22 : f32
      %c0_23 = arith.constant 0 : index
      %c0_24 = arith.constant 0 : index
      %27 = vector.load %arg7[%c0_23, %c0_24] : memref<1x128xf32, #tpu.memory_space<vmem>>, vector<1x128xf32>
      %28 = vector.shape_cast %27 : vector<1x128xf32> to vector<1x1x128xf32>
      %cst_25 = arith.constant dense<0.000000e+00> : vector<1xf32>
      %29 = vector.multi_reduction <add>, %28, %cst_25 [1, 2] : vector<1x1x128xf32> to vector<1xf32>
      %30 = vector.shape_cast %29 : vector<1xf32> to vector<1x1x1xf32>
      %31 = vector.extract %30[0, 0, 0] : f32 from vector<1x1x1xf32>
      %c0_26 = arith.constant 0 : index
      %c0_27 = arith.constant 0 : index
      %32 = vector.load %arg8[%c0_26, %c0_27] : memref<1x128xf32, #tpu.memory_space<vmem>>, vector<1x128xf32>
      %33 = vector.shape_cast %32 : vector<1x128xf32> to vector<1x1x128xf32>
      %cst_28 = arith.constant dense<0.000000e+00> : vector<1xf32>
      %34 = vector.multi_reduction <add>, %33, %cst_28 [1, 2] : vector<1x1x128xf32> to vector<1xf32>
      %35 = vector.shape_cast %34 : vector<1xf32> to vector<1x1x1xf32>
      %36 = vector.extract %35[0, 0, 0] : f32 from vector<1x1x1xf32>
      %cst_29 = arith.constant 5.000000e-01 : f32
      %37 = arith.mulf %cst_29, %26 : f32
      %38 = arith.addf %37, %31 : f32
      %cst_30 = arith.constant 5.000000e-01 : f32
      %39 = arith.mulf %cst_30, %36 : f32
      %40 = arith.subf %38, %39 : f32
      %cst_31 = arith.constant 1.000000e+00 : f32
      %41 = arith.mulf %cst_31, %40 : f32
      %42 = vector.broadcast %41 : f32 to vector<1x8x128xf32>
      %c0_32 = arith.constant 0 : index
      %c0_33 = arith.constant 0 : index
      %c0_34 = arith.constant 0 : index
      %43 = vector.load %arg4[%c0_32, %c0_33, %c0_34] : memref<1x8x128xf32, #tpu.memory_space<vmem>>, vector<1x8x128xf32>
      tpu.vector_store %arg4[%c0_32, %c0_33, %c0_34], %42 {strides = array<i32>} : memref<1x8x128xf32, #tpu.memory_space<vmem>>, vector<1x8x128xf32>,
    } else {
    }
    return
  }
  func.func @transform_0(%arg0: i32, %arg1: i32) -> (i32, i32) {
    %c0_i32 = arith.constant 0 : i32
    %c0_i32_0 = arith.constant 0 : i32
    return %c0_i32, %arg1 : i32, i32
  }
  func.func @transform_1(%arg0: i32, %arg1: i32) -> (i32, i32) {
    %c0_i32 = arith.constant 0 : i32
    %c0_i32_0 = arith.constant 0 : i32
    return %c0_i32, %arg1 : i32, i32
  }
  func.func @transform_2(%arg0: i32, %arg1: i32) -> (i32, i32, i32) {
    %c0_i32 = arith.constant 0 : i32
    %c0_i32_0 = arith.constant 0 : i32
    %c0_i32_1 = arith.constant 0 : i32
    return %arg0, %c0_i32, %c0_i32_0 : i32, i32, i32
  }
}

</mosaic_0001>

<llo_original>
// kernel: tpu_custom_call.1
$region0: #{tpu_custom_call.1}
  #allocation0 [shape = 'u32[]', space=smem, size = 0x4, offset = 0x4, fixed_abs, tag = 'smem constant byte address 0x4 - core index']
  #allocation1 [shape = 'u32[72,128]{1,0:T(1,128)}', space=vmem, size = 0x9000, scoped, tag = 'internal scratch']
  #allocation2 [shape = 'f32[128,128]{1,0:T(8,128)}', space=vmem, size = 0x10000, scoped, tag = 'scratch operand']
  #allocation3 [shape = 'f32[128,128]{1,0:T(8,128)}', space=vmem, size = 0x10000, scoped, tag = 'scratch operand']
  #allocation4 [shape = 'f32[1,128]{1,0:T(1,128)}', space=vmem, size = 0x200, scoped, tag = 'scratch operand']
  #allocation5 [shape = 'f32[1,128]{1,0:T(1,128)}', space=vmem, size = 0x200, scoped, tag = 'scratch operand']
  %s0 = inlined_call_operand.hbm [shape: f32[128,128], index: 0, kind: input, shape index: {}]
  %s1 = inlined_call_operand.hbm [shape: f32[128,128], index: 1, kind: input, shape index: {}]
  %s2 = inlined_call_operand.hbm [shape: f32[1,8,128], index: 2, kind: output, shape index: {}]
  %s3 = sld [smem:[#allocation0]]
  $region38: #{tpu_custom_call.1} parent=0
    _
  %s5 = ssub.s32 1, %s3
  %s6 = scalar_select 0, %s5, %s3
  $region1: #{tpu_custom_call.1} parent=0
    #allocation6 [shape = 'u8[65536]{0}', space=vmem, size = 0x10000, scoped, tag = 'input window, operand 0, single buffered']
    #allocation7 [shape = 's32[1]{0}', space=sflag, size = 0x4, scoped, tag = 'scoped memory for tpu_custom_call.1']
    #allocation8 [shape = 's32[1]{0}', space=sflag, size = 0x4, scoped, tag = 'scoped memory for tpu_custom_call.1']
    #allocation9 [shape = 'u8[65536]{0}', space=vmem, size = 0x10000, scoped, tag = 'input window, operand 1, single buffered']
    #allocation10 [shape = 's32[1]{0}', space=sflag, size = 0x4, scoped, tag = 'scoped memory for tpu_custom_call.1']
    #allocation11 [shape = 'u8[4096]{0}', space=vmem, size = 0x1000, scoped, tag = 'output window, operand 0, single buffered']
    %7 = vsyncpa [#allocation7], 0
    %8 = vsyncpa [#allocation10], 0
    %9 = vsyncpa [#allocation8], 0
    // Predicated region
    $region2: #{tpu_custom_call.1} parent=1 // pred_check
      _
    $region3: #{tpu_custom_call.1} parent=1 // pred_check_branch
      %11 = sbr.rel (0) target = $region5
    $region4: #{tpu_custom_call.1} parent=1 // pred_region
      %13 = vsyncadd [#allocation7], 0
      %s14 = sshll.u32 %s0, 4
      %s15 = int_to_ptr.hbm [resolvable:$true] %s14
      %s16 = sshll.u32 [#allocation6], 4
      %s17 = int_to_ptr.vmem [resolvable:$true] %s16
      %22 = dma.hbm_to_vmem [thread:$0]  %s15, 2048, %s17, [#allocation7], 128, 128, 8
    $region5: #{tpu_custom_call.1} parent=1 // pred_fallthru
      _
    // Predicated region
    $region6: #{tpu_custom_call.1} parent=1 // pred_check
      _
    $region7: #{tpu_custom_call.1} parent=1 // pred_check_branch
      %24 = sbr.rel (0) target = $region9
    $region8: #{tpu_custom_call.1} parent=1 // pred_region
      %26 = vsyncadd [#allocation10], 0
      %s27 = sshll.u32 %s1, 4
      %s28 = int_to_ptr.hbm [resolvable:$true] %s27
      %s29 = sshll.u32 [#allocation9], 4
      %s30 = int_to_ptr.vmem [resolvable:$true] %s29
      %35 = dma.hbm_to_vmem [thread:$0]  %s28, 2048, %s30, [#allocation10], 128, 128, 8
    $region9: #{tpu_custom_call.1} parent=1 // pred_fallthru
      _
    // Predicated region
    $region10: #{tpu_custom_call.1} parent=1 // pred_check
      _
    $region11: #{tpu_custom_call.1} parent=1 // pred_check_branch
      %37 = sbr.rel (0) target = $region13
    $region12: #{tpu_custom_call.1} parent=1 // pred_region
      %39 = dma.done [#allocation7], 2048
    $region13: #{tpu_custom_call.1} parent=1 // pred_fallthru
      _
    // Predicated region
    $region14: #{tpu_custom_call.1} parent=1 // pred_check
      _
    $region15: #{tpu_custom_call.1} parent=1 // pred_check_branch
      %41 = sbr.rel (0) target = $region17
    $region16: #{tpu_custom_call.1} parent=1 // pred_region
      %43 = dma.done [#allocation10], 2048
    $region17: #{tpu_custom_call.1} parent=1 // pred_fallthru
      _
    %p44 = scmp.eq.s32.totalorder 0, 0
    // Predicated region
    $region18: #{tpu_custom_call.1} parent=1 // pred_check
      %p45 = pneg %p44
    $region19: #{tpu_custom_call.1} parent=1 // pred_check_branch
      %47 = sbr.rel (%p45) target = $region21
    $region20: #{tpu_custom_call.1} parent=1 // pred_region
      %48 = vst [vmem:[#allocation2] sm:$0xff] 0.0
      %49 = vst [vmem:[#allocation2 + $0x8] sm:$0xff] 0.0
      %50 = vst [vmem:[#allocation2 + $0x10] sm:$0xff] 0.0
      %51 = vst [vmem:[#allocation2 + $0x18] sm:$0xff] 0.0
      %52 = vst [vmem:[#allocation2 + $0x20] sm:$0xff] 0.0
      %53 = vst [vmem:[#allocation2 + $0x28] sm:$0xff] 0.0
      %54 = vst [vmem:[#allocation2 + $0x30] sm:$0xff] 0.0
      %55 = vst [vmem:[#allocation2 + $0x38] sm:$0xff] 0.0
      %56 = vst [vmem:[#allocation2 + $0x40] sm:$0xff] 0.0
      %57 = vst [vmem:[#allocation2 + $0x48] sm:$0xff] 0.0
      %58 = vst [vmem:[#allocation2 + $0x50] sm:$0xff] 0.0
      %59 = vst [vmem:[#allocation2 + $0x58] sm:$0xff] 0.0
      %60 = vst [vmem:[#allocation2 + $0x60] sm:$0xff] 0.0
      %61 = vst [vmem:[#allocation2 + $0x68] sm:$0xff] 0.0
      %62 = vst [vmem:[#allocation2 + $0x70] sm:$0xff] 0.0
      %63 = vst [vmem:[#allocation2 + $0x78] sm:$0xff] 0.0
      %64 = vst [vmem:[#allocation3] sm:$0xff] 0.0
      %65 = vst [vmem:[#allocation3 + $0x8] sm:$0xff] 0.0
      %66 = vst [vmem:[#allocation3 + $0x10] sm:$0xff] 0.0
      %67 = vst [vmem:[#allocation3 + $0x18] sm:$0xff] 0.0
      %68 = vst [vmem:[#allocation3 + $0x20] sm:$0xff] 0.0
      %69 = vst [vmem:[#allocation3 + $0x28] sm:$0xff] 0.0
      %70 = vst [vmem:[#allocation3 + $0x30] sm:$0xff] 0.0
      %71 = vst [vmem:[#allocation3 + $0x38] sm:$0xff] 0.0
      %72 = vst [vmem:[#allocation3 + $0x40] sm:$0xff] 0.0
      %73 = vst [vmem:[#allocation3 + $0x48] sm:$0xff] 0.0
      %74 = vst [vmem:[#allocation3 + $0x50] sm:$0xff] 0.0
      %75 = vst [vmem:[#allocation3 + $0x58] sm:$0xff] 0.0
      %76 = vst [vmem:[#allocation3 + $0x60] sm:$0xff] 0.0
      %77 = vst [vmem:[#allocation3 + $0x68] sm:$0xff] 0.0
      %78 = vst [vmem:[#allocation3 + $0x70] sm:$0xff] 0.0
      %79 = vst [vmem:[#allocation3 + $0x78] sm:$0xff] 0.0
      %80 = vst [vmem:[#allocation4] sm:$0x1] 0.0
      %81 = vst [vmem:[#allocation5] sm:$0x1] 0.0
    $region21: #{tpu_custom_call.1} parent=1 // pred_fallthru
      _
    %v82 = vld [vmem:[#allocation6] sm:$0xff]
    %v83 = vld [vmem:[#allocation6 + $0x8] sm:$0xff]
    %v84 = vld [vmem:[#allocation6 + $0x10] sm:$0xff]
    %v85 = vld [vmem:[#allocation6 + $0x18] sm:$0xff]
    %v86 = vld [vmem:[#allocation6 + $0x20] sm:$0xff]
    %v87 = vld [vmem:[#allocation6 + $0x28] sm:$0xff]
    %v88 = vld [vmem:[#allocation6 + $0x30] sm:$0xff]
    %v89 = vld [vmem:[#allocation6 + $0x38] sm:$0xff]
    %v90 = vld [vmem:[#allocation6 + $0x40] sm:$0xff]
    %v91 = vld [vmem:[#allocation6 + $0x48] sm:$0xff]
    %v92 = vld [vmem:[#allocation6 + $0x50] sm:$0xff]
    %v93 = vld [vmem:[#allocation6 + $0x58] sm:$0xff]
    %v94 = vld [vmem:[#allocation6 + $0x60] sm:$0xff]
    %v95 = vld [vmem:[#allocation6 + $0x68] sm:$0xff]
    %v96 = vld [vmem:[#allocation6 + $0x70] sm:$0xff]
    %v97 = vld [vmem:[#allocation6 + $0x78] sm:$0xff]
    %v98 = vld [vmem:[#allocation9] sm:$0xff]
    %v99 = vld [vmem:[#allocation9 + $0x8] sm:$0xff]
    %v100 = vld [vmem:[#allocation9 + $0x10] sm:$0xff]
    %v101 = vld [vmem:[#allocation9 + $0x18] sm:$0xff]
    %v102 = vld [vmem:[#allocation9 + $0x20] sm:$0xff]
    %v103 = vld [vmem:[#allocation9 + $0x28] sm:$0xff]
    %v104 = vld [vmem:[#allocation9 + $0x30] sm:$0xff]
    %v105 = vld [vmem:[#allocation9 + $0x38] sm:$0xff]
    %v106 = vld [vmem:[#allocation9 + $0x40] sm:$0xff]
    %v107 = vld [vmem:[#allocation9 + $0x48] sm:$0xff]
    %v108 = vld [vmem:[#allocation9 + $0x50] sm:$0xff]
    %v109 = vld [vmem:[#allocation9 + $0x58] sm:$0xff]
    %v110 = vld [vmem:[#allocation9 + $0x60] sm:$0xff]
    %v111 = vld [vmem:[#allocation9 + $0x68] sm:$0xff]
    %v112 = vld [vmem:[#allocation9 + $0x70] sm:$0xff]
    %v113 = vld [vmem:[#allocation9 + $0x78] sm:$0xff]
    %v114 = vld [vmem:[#allocation2] sm:$0xff]
    %v115 = vld [vmem:[#allocation2 + $0x8] sm:$0xff]
    %v116 = vld [vmem:[#allocation2 + $0x10] sm:$0xff]
    %v117 = vld [vmem:[#allocation2 + $0x18] sm:$0xff]
    %v118 = vld [vmem:[#allocation2 + $0x20] sm:$0xff]
    %v119 = vld [vmem:[#allocation2 + $0x28] sm:$0xff]
    %v120 = vld [vmem:[#allocation2 + $0x30] sm:$0xff]
    %v121 = vld [vmem:[#allocation2 + $0x38] sm:$0xff]
    %v122 = vld [vmem:[#allocation2 + $0x40] sm:$0xff]
    %v123 = vld [vmem:[#allocation2 + $0x48] sm:$0xff]
    %v124 = vld [vmem:[#allocation2 + $0x50] sm:$0xff]
    %v125 = vld [vmem:[#allocation2 + $0x58] sm:$0xff]
    %v126 = vld [vmem:[#allocation2 + $0x60] sm:$0xff]
    %v127 = vld [vmem:[#allocation2 + $0x68] sm:$0xff]
    %v128 = vld [vmem:[#allocation2 + $0x70] sm:$0xff]
    %v129 = vld [vmem:[#allocation2 + $0x78] sm:$0xff]
    %130 = vmatpush.xpose.msra.mxu0 %v97
    %131 = vmatpush.xpose.msra.mxu0 %v96
    %132 = vmatpush.xpose.msra.mxu0 %v95
    %133 = vmatpush.xpose.msra.mxu0 %v94
    %134 = vmatpush.xpose.msra.mxu0 %v93
    %135 = vmatpush.xpose.msra.mxu0 %v92
    %136 = vmatpush.xpose.msra.mxu0 %v91
    %137 = vmatpush.xpose.msra.mxu0 %v90
    %138 = vmatpush.xpose.msra.mxu0 %v89
    %139 = vmatpush.xpose.msra.mxu0 %v88
    %140 = vmatpush.xpose.msra.mxu0 %v87
    %141 = vmatpush.xpose.msra.mxu0 %v86
    %142 = vmatpush.xpose.msra.mxu0 %v85
    %143 = vmatpush.xpose.msra.mxu0 %v84
    %144 = vmatpush.xpose.msra.mxu0 %v83
    %145 = vmatpush.xpose.msra.mxu0 %v82
    %146 = vmatmul.f32.gmra.mxu0 %v82
    %v147 = vpop.f32.mrf.mxu0
    %v148 = vadd.f32 0.0, %v147
    %149 = vmatmul.f32.gmra.mxu0 %v83
    %v150 = vpop.f32.mrf.mxu0
    %v151 = vadd.f32 0.0, %v150
    %152 = vmatmul.f32.gmra.mxu0 %v84
    %v153 = vpop.f32.mrf.mxu0
    %v154 = vadd.f32 0.0, %v153
    %155 = vmatmul.f32.gmra.mxu0 %v85
    %v156 = vpop.f32.mrf.mxu0
    %v157 = vadd.f32 0.0, %v156
    %158 = vmatmul.f32.gmra.mxu0 %v86
    %v159 = vpop.f32.mrf.mxu0
    %v160 = vadd.f32 0.0, %v159
    %161 = vmatmul.f32.gmra.mxu0 %v87
    %v162 = vpop.f32.mrf.mxu0
    %v163 = vadd.f32 0.0, %v162
    %164 = vmatmul.f32.gmra.mxu0 %v88
    %v165 = vpop.f32.mrf.mxu0
    %v166 = vadd.f32 0.0, %v165
    %167 = vmatmul.f32.gmra.mxu0 %v89
    %v168 = vpop.f32.mrf.mxu0
    %v169 = vadd.f32 0.0, %v168
    %170 = vmatmul.f32.gmra.mxu0 %v90
    %v171 = vpop.f32.mrf.mxu0
    %v172 = vadd.f32 0.0, %v171
    %173 = vmatmul.f32.gmra.mxu0 %v91
    %v174 = vpop.f32.mrf.mxu0
    %v175 = vadd.f32 0.0, %v174
    %176 = vmatmul.f32.gmra.mxu0 %v92
    %v177 = vpop.f32.mrf.mxu0
    %v178 = vadd.f32 0.0, %v177
    %179 = vmatmul.f32.gmra.mxu0 %v93
    %v180 = vpop.f32.mrf.mxu0
    %v181 = vadd.f32 0.0, %v180
    %182 = vmatmul.f32.gmra.mxu0 %v94
    %v183 = vpop.f32.mrf.mxu0
    %v184 = vadd.f32 0.0, %v183
    %185 = vmatmul.f32.gmra.mxu0 %v95
    %v186 = vpop.f32.mrf.mxu0
    %v187 = vadd.f32 0.0, %v186
    %188 = vmatmul.f32.gmra.mxu0 %v96
    %v189 = vpop.f32.mrf.mxu0
    %v190 = vadd.f32 0.0, %v189
    %191 = vmatmul.f32.gmra.mxu0 %v97
    %v192 = vpop.f32.mrf.mxu0
    %v193 = vadd.f32 0.0, %v192
    %194 = vdwg.mxu0
    %v195 = vadd.f32 %v114, %v148
    %v196 = vadd.f32 %v115, %v151
    %v197 = vadd.f32 %v116, %v154
    %v198 = vadd.f32 %v117, %v157
    %v199 = vadd.f32 %v118, %v160
    %v200 = vadd.f32 %v119, %v163
    %v201 = vadd.f32 %v120, %v166
    %v202 = vadd.f32 %v121, %v169
    %v203 = vadd.f32 %v122, %v172
    %v204 = vadd.f32 %v123, %v175
    %v205 = vadd.f32 %v124, %v178
    %v206 = vadd.f32 %v125, %v181
    %v207 = vadd.f32 %v126, %v184
    %v208 = vadd.f32 %v127, %v187
    %v209 = vadd.f32 %v128, %v190
    %v210 = vadd.f32 %v129, %v193
    %211 = vst [vmem:[#allocation2] sm:$0xff] %v195
    %212 = vst [vmem:[#allocation2 + $0x8] sm:$0xff] %v196
    %213 = vst [vmem:[#allocation2 + $0x10] sm:$0xff] %v197
    %214 = vst [vmem:[#allocation2 + $0x18] sm:$0xff] %v198
    %215 = vst [vmem:[#allocation2 + $0x20] sm:$0xff] %v199
    %216 = vst [vmem:[#allocation2 + $0x28] sm:$0xff] %v200
    %217 = vst [vmem:[#allocation2 + $0x30] sm:$0xff] %v201
    %218 = vst [vmem:[#allocation2 + $0x38] sm:$0xff] %v202
    %219 = vst [vmem:[#allocation2 + $0x40] sm:$0xff] %v203
    %220 = vst [vmem:[#allocation2 + $0x48] sm:$0xff] %v204
    %221 = vst [vmem:[#allocation2 + $0x50] sm:$0xff] %v205
    %222 = vst [vmem:[#allocation2 + $0x58] sm:$0xff] %v206
    %223 = vst [vmem:[#allocation2 + $0x60] sm:$0xff] %v207
    %224 = vst [vmem:[#allocation2 + $0x68] sm:$0xff] %v208
    %225 = vst [vmem:[#allocation2 + $0x70] sm:$0xff] %v209
    %226 = vst [vmem:[#allocation2 + $0x78] sm:$0xff] %v210
    %v227 = vld [vmem:[#allocation3] sm:$0xff]
    %v228 = vld [vmem:[#allocation3 + $0x8] sm:$0xff]
    %v229 = vld [vmem:[#allocation3 + $0x10] sm:$0xff]
    %v230 = vld [vmem:[#allocation3 + $0x18] sm:$0xff]
    %v231 = vld [vmem:[#allocation3 + $0x20] sm:$0xff]
    %v232 = vld [vmem:[#allocation3 + $0x28] sm:$0xff]
    %v233 = vld [vmem:[#allocation3 + $0x30] sm:$0xff]
    %v234 = vld [vmem:[#allocation3 + $0x38] sm:$0xff]
    %v235 = vld [vmem:[#allocation3 + $0x40] sm:$0xff]
    %v236 = vld [vmem:[#allocation3 + $0x48] sm:$0xff]
    %v237 = vld [vmem:[#allocation3 + $0x50] sm:$0xff]
    %v238 = vld [vmem:[#allocation3 + $0x58] sm:$0xff]
    %v239 = vld [vmem:[#allocation3 + $0x60] sm:$0xff]
    %v240 = vld [vmem:[#allocation3 + $0x68] sm:$0xff]
    %v241 = vld [vmem:[#allocation3 + $0x70] sm:$0xff]
    %v242 = vld [vmem:[#allocation3 + $0x78] sm:$0xff]
    %243 = vmatpush.xpose.msra.mxu0 %v113
    %244 = vmatpush.xpose.msra.mxu0 %v112
    %245 = vmatpush.xpose.msra.mxu0 %v111
    %246 = vmatpush.xpose.msra.mxu0 %v110
    %247 = vmatpush.xpose.msra.mxu0 %v109
    %248 = vmatpush.xpose.msra.mxu0 %v108
    %249 = vmatpush.xpose.msra.mxu0 %v107
    %250 = vmatpush.xpose.msra.mxu0 %v106
    %251 = vmatpush.xpose.msra.mxu0 %v105
    %252 = vmatpush.xpose.msra.mxu0 %v104
    %253 = vmatpush.xpose.msra.mxu0 %v103
    %254 = vmatpush.xpose.msra.mxu0 %v102
    %255 = vmatpush.xpose.msra.mxu0 %v101
    %256 = vmatpush.xpose.msra.mxu0 %v100
    %257 = vmatpush.xpose.msra.mxu0 %v99
    %258 = vmatpush.xpose.msra.mxu0 %v98
    %259 = vmatmul.f32.gmra.mxu0 %v98
    %v260 = vpop.f32.mrf.mxu0
    %v261 = vadd.f32 0.0, %v260
    %262 = vmatmul.f32.gmra.mxu0 %v99
    %v263 = vpop.f32.mrf.mxu0
    %v264 = vadd.f32 0.0, %v263
    %265 = vmatmul.f32.gmra.mxu0 %v100
    %v266 = vpop.f32.mrf.mxu0
    %v267 = vadd.f32 0.0, %v266
    %268 = vmatmul.f32.gmra.mxu0 %v101
    %v269 = vpop.f32.mrf.mxu0
    %v270 = vadd.f32 0.0, %v269
    %271 = vmatmul.f32.gmra.mxu0 %v102
    %v272 = vpop.f32.mrf.mxu0
    %v273 = vadd.f32 0.0, %v272
    %274 = vmatmul.f32.gmra.mxu0 %v103
    %v275 = vpop.f32.mrf.mxu0
    %v276 = vadd.f32 0.0, %v275
    %277 = vmatmul.f32.gmra.mxu0 %v104
    %v278 = vpop.f32.mrf.mxu0
    %v279 = vadd.f32 0.0, %v278
    %280 = vmatmul.f32.gmra.mxu0 %v105
    %v281 = vpop.f32.mrf.mxu0
    %v282 = vadd.f32 0.0, %v281
    %283 = vmatmul.f32.gmra.mxu0 %v106
    %v284 = vpop.f32.mrf.mxu0
    %v285 = vadd.f32 0.0, %v284
    %286 = vmatmul.f32.gmra.mxu0 %v107
    %v287 = vpop.f32.mrf.mxu0
    %v288 = vadd.f32 0.0, %v287
    %289 = vmatmul.f32.gmra.mxu0 %v108
    %v290 = vpop.f32.mrf.mxu0
    %v291 = vadd.f32 0.0, %v290
    %292 = vmatmul.f32.gmra.mxu0 %v109
    %v293 = vpop.f32.mrf.mxu0
    %v294 = vadd.f32 0.0, %v293
    %295 = vmatmul.f32.gmra.mxu0 %v110
    %v296 = vpop.f32.mrf.mxu0
    %v297 = vadd.f32 0.0, %v296
    %298 = vmatmul.f32.gmra.mxu0 %v111
    %v299 = vpop.f32.mrf.mxu0
    %v300 = vadd.f32 0.0, %v299
    %301 = vmatmul.f32.gmra.mxu0 %v112
    %v302 = vpop.f32.mrf.mxu0
    %v303 = vadd.f32 0.0, %v302
    %304 = vmatmul.f32.gmra.mxu0 %v113
    %v305 = vpop.f32.mrf.mxu0
    %v306 = vadd.f32 0.0, %v305
    %307 = vdwg.mxu0
    %v308 = vadd.f32 %v227, %v261
    %v309 = vadd.f32 %v228, %v264
    %v310 = vadd.f32 %v229, %v267
    %v311 = vadd.f32 %v230, %v270
    %v312 = vadd.f32 %v231, %v273
    %v313 = vadd.f32 %v232, %v276
    %v314 = vadd.f32 %v233, %v279
    %v315 = vadd.f32 %v234, %v282
    %v316 = vadd.f32 %v235, %v285
    %v317 = vadd.f32 %v236, %v288
    %v318 = vadd.f32 %v237, %v291
    %v319 = vadd.f32 %v238, %v294
    %v320 = vadd.f32 %v239, %v297
    %v321 = vadd.f32 %v240, %v300
    %v322 = vadd.f32 %v241, %v303
    %v323 = vadd.f32 %v242, %v306
    %324 = vst [vmem:[#allocation3] sm:$0xff] %v308
    %325 = vst [vmem:[#allocation3 + $0x8] sm:$0xff] %v309
    %326 = vst [vmem:[#allocation3 + $0x10] sm:$0xff] %v310
    %327 = vst [vmem:[#allocation3 + $0x18] sm:$0xff] %v311
    %328 = vst [vmem:[#allocation3 + $0x20] sm:$0xff] %v312
    %329 = vst [vmem:[#allocation3 + $0x28] sm:$0xff] %v313
    %330 = vst [vmem:[#allocation3 + $0x30] sm:$0xff] %v314
    %331 = vst [vmem:[#allocation3 + $0x38] sm:$0xff] %v315
    %332 = vst [vmem:[#allocation3 + $0x40] sm:$0xff] %v316
    %333 = vst [vmem:[#allocation3 + $0x48] sm:$0xff] %v317
    %334 = vst [vmem:[#allocation3 + $0x50] sm:$0xff] %v318
    %335 = vst [vmem:[#allocation3 + $0x58] sm:$0xff] %v319
    %336 = vst [vmem:[#allocation3 + $0x60] sm:$0xff] %v320
    %337 = vst [vmem:[#allocation3 + $0x68] sm:$0xff] %v321
    %338 = vst [vmem:[#allocation3 + $0x70] sm:$0xff] %v322
    %339 = vst [vmem:[#allocation3 + $0x78] sm:$0xff] %v323
    %p340 = scmp.eq.s32.totalorder 0, 0
    // Predicated region
    $region22: #{tpu_custom_call.1} parent=1 // pred_check
      %p341 = pneg %p340
    $region23: #{tpu_custom_call.1} parent=1 // pred_check_branch
      %343 = sbr.rel (%p341) target = $region25
    $region24: #{tpu_custom_call.1} parent=1 // pred_region
      %v344 = vmul.f32 %v82, %v98
      %v345 = vmul.f32 %v83, %v99
      %v346 = vmul.f32 %v84, %v100
      %v347 = vmul.f32 %v85, %v101
      %v348 = vmul.f32 %v86, %v102
      %v349 = vmul.f32 %v87, %v103
      %v350 = vmul.f32 %v88, %v104
      %v351 = vmul.f32 %v89, %v105
      %v352 = vmul.f32 %v90, %v106
      %v353 = vmul.f32 %v91, %v107
      %v354 = vmul.f32 %v92, %v108
      %v355 = vmul.f32 %v93, %v109
      %v356 = vmul.f32 %v94, %v110
      %v357 = vmul.f32 %v95, %v111
      %v358 = vmul.f32 %v96, %v112
      %v359 = vmul.f32 %v97, %v113
      %v360 = vadd.f32 %v344, %v345
      %v361 = vadd.f32 %v360, %v346
      %v362 = vadd.f32 %v361, %v347
      %v363 = vadd.f32 %v362, %v348
      %v364 = vadd.f32 %v363, %v349
      %v365 = vadd.f32 %v364, %v350
      %v366 = vadd.f32 %v365, %v351
      %v367 = vadd.f32 %v366, %v352
      %v368 = vadd.f32 %v367, %v353
      %v369 = vadd.f32 %v368, %v354
      %v370 = vadd.f32 %v369, %v355
      %v371 = vadd.f32 %v370, %v356
      %v372 = vadd.f32 %v371, %v357
      %v373 = vadd.f32 %v372, %v358
      %v374 = vadd.f32 %v373, %v359
      %v375 = vrot.slane %v374, 4
      %v376 = vadd.f32 %v374, %v375
      %v377 = vrot.slane %v376, 2
      %v378 = vadd.f32 %v376, %v377
      %v379 = vrot.slane %v378, 1
      %v380 = vadd.f32 %v378, %v379
      %v381 = vmul.f32 %v380, 0.125
      %v382 = vsub.f32 %v381, 1.0
      %v383 = vmul.f32 %v382, %v382
      %v384 = vmul.f32 %v381, %v381
      %v385 = vld [vmem:[#allocation4] sm:$0x1]
      %v386 = vadd.f32 %v383, 0.0
      %v387 = vadd.f32 %v385, %v386
      %388 = vst [vmem:[#allocation4] sm:$0x1] %v387
      %v389 = vld [vmem:[#allocation5] sm:$0x1]
      %v390 = vadd.f32 %v384, 0.0
      %v391 = vadd.f32 %v389, %v390
      %392 = vst [vmem:[#allocation5] sm:$0x1] %v391
    $region25: #{tpu_custom_call.1} parent=1 // pred_fallthru
      _
    // Predicated region
    $region26: #{tpu_custom_call.1} parent=1 // pred_check
      %p393 = pneg %p44
    $region27: #{tpu_custom_call.1} parent=1 // pred_check_branch
      %395 = sbr.rel (%p393) target = $region29
    $region28: #{tpu_custom_call.1} parent=1 // pred_region
      %v396 = vld [vmem:[#allocation2] sm:$0xff]
      %v397 = vld [vmem:[#allocation2 + $0x8] sm:$0xff]
      %v398 = vld [vmem:[#allocation2 + $0x10] sm:$0xff]
      %v399 = vld [vmem:[#allocation2 + $0x18] sm:$0xff]
      %v400 = vld [vmem:[#allocation2 + $0x20] sm:$0xff]
      %v401 = vld [vmem:[#allocation2 + $0x28] sm:$0xff]
      %v402 = vld [vmem:[#allocation2 + $0x30] sm:$0xff]
      %v403 = vld [vmem:[#allocation2 + $0x38] sm:$0xff]
      %v404 = vld [vmem:[#allocation2 + $0x40] sm:$0xff]
      %v405 = vld [vmem:[#allocation2 + $0x48] sm:$0xff]
      %v406 = vld [vmem:[#allocation2 + $0x50] sm:$0xff]
      %v407 = vld [vmem:[#allocation2 + $0x58] sm:$0xff]
      %v408 = vld [vmem:[#allocation2 + $0x60] sm:$0xff]
      %v409 = vld [vmem:[#allocation2 + $0x68] sm:$0xff]
      %v410 = vld [vmem:[#allocation2 + $0x70] sm:$0xff]
      %v411 = vld [vmem:[#allocation2 + $0x78] sm:$0xff]
      %v412 = vld [vmem:[#allocation3] sm:$0xff]
      %v413 = vld [vmem:[#allocation3 + $0x8] sm:$0xff]
      %v414 = vld [vmem:[#allocation3 + $0x10] sm:$0xff]
      %v415 = vld [vmem:[#allocation3 + $0x18] sm:$0xff]
      %v416 = vld [vmem:[#allocation3 + $0x20] sm:$0xff]
      %v417 = vld [vmem:[#allocation3 + $0x28] sm:$0xff]
      %v418 = vld [vmem:[#allocation3 + $0x30] sm:$0xff]
      %v419 = vld [vmem:[#allocation3 + $0x38] sm:$0xff]
      %v420 = vld [vmem:[#allocation3 + $0x40] sm:$0xff]
      %v421 = vld [vmem:[#allocation3 + $0x48] sm:$0xff]
      %v422 = vld [vmem:[#allocation3 + $0x50] sm:$0xff]
      %v423 = vld [vmem:[#allocation3 + $0x58] sm:$0xff]
      %v424 = vld [vmem:[#allocation3 + $0x60] sm:$0xff]
      %v425 = vld [vmem:[#allocation3 + $0x68] sm:$0xff]
      %v426 = vld [vmem:[#allocation3 + $0x70] sm:$0xff]
      %v427 = vld [vmem:[#allocation3 + $0x78] sm:$0xff]
      %v428 = vmul.f32 %v396, %v412
      %v429 = vmul.f32 %v397, %v413
      %v430 = vmul.f32 %v398, %v414
      %v431 = vmul.f32 %v399, %v415
      %v432 = vmul.f32 %v400, %v416
      %v433 = vmul.f32 %v401, %v417
      %v434 = vmul.f32 %v402, %v418
      %v435 = vmul.f32 %v403, %v419
      %v436 = vmul.f32 %v404, %v420
      %v437 = vmul.f32 %v405, %v421
      %v438 = vmul.f32 %v406, %v422
      %v439 = vmul.f32 %v407, %v423
      %v440 = vmul.f32 %v408, %v424
      %v441 = vmul.f32 %v409, %v425
      %v442 = vmul.f32 %v410, %v426
      %v443 = vmul.f32 %v411, %v427
      %v444 = vadd.f32 %v428, %v429
      %v445 = vadd.f32 %v444, %v430
      %v446 = vadd.f32 %v445, %v431
      %v447 = vadd.f32 %v446, %v432
      %v448 = vadd.f32 %v447, %v433
      %v449 = vadd.f32 %v448, %v434
      %v450 = vadd.f32 %v449, %v435
      %v451 = vadd.f32 %v450, %v436
      %v452 = vadd.f32 %v451, %v437
      %v453 = vadd.f32 %v452, %v438
      %v454 = vadd.f32 %v453, %v439
      %v455 = vadd.f32 %v454, %v440
      %v456 = vadd.f32 %v455, %v441
      %v457 = vadd.f32 %v456, %v442
      %v458 = vadd.f32 %v457, %v443
      %459 = vadd.xlane.f32.xlu0 %v458
      %v460 = vpop.xlane.xlu0 %459
      %v461 = vrot.slane %v460, 4
      %v462 = vadd.f32 %v460, %v461
      %v463 = vrot.slane %v462, 2
      %v464 = vadd.f32 %v462, %v463
      %v465 = vrot.slane %v464, 1
      %v466 = vadd.f32 %v464, %v465
      %s467 = vtos %v466
      %s468 = smul.f32 %s467, 0.015625
      %v469 = vld [vmem:[#allocation4] sm:$0x1]
      %vm470 = vcmask 1040384
      %v471 = vsel %vm470, %v469, 0.0
      %472 = vadd.xlane.f32.xlu0 %v471
      %v473 = vpop.xlane.xlu0 %472
      %v474 = vrot.slane %v473, 4
      %v475 = vadd.f32 %v473, %v474
      %v476 = vrot.slane %v475, 2
      %v477 = vadd.f32 %v475, %v476
      %v478 = vrot.slane %v477, 1
      %v479 = vadd.f32 %v477, %v478
      %s480 = vtos %v479
      %v481 = vld [vmem:[#allocation5] sm:$0x1]
      %v482 = vsel %vm470, %v481, 0.0
      %483 = vadd.xlane.f32.xlu0 %v482
      %v484 = vpop.xlane.xlu0 %483
      %v485 = vrot.slane %v484, 4
      %v486 = vadd.f32 %v484, %v485
      %v487 = vrot.slane %v486, 2
      %v488 = vadd.f32 %v486, %v487
      %v489 = vrot.slane %v488, 1
      %v490 = vadd.f32 %v488, %v489
      %s491 = vtos %v490
      %s492 = smul.f32 %s468, 0.5
      %s493 = sadd.f32 %s492, %s480
      %s494 = smul.f32 %s491, 0.5
      %s495 = ssub.f32 %s493, %s494
      %v496 = vstv %s495
      %497 = vst [vmem:[#allocation11] sm:$0xff] %v496
    $region29: #{tpu_custom_call.1} parent=1 // pred_fallthru
      _
    // Predicated region
    $region30: #{tpu_custom_call.1} parent=1 // pred_check
      _
    $region31: #{tpu_custom_call.1} parent=1 // pred_check_branch
      %499 = sbr.rel (0) target = $region33
    $region32: #{tpu_custom_call.1} parent=1 // pred_region
      %501 = vsyncadd [#allocation8], 0
      %s503 = sshll.u32 [#allocation11], 4
      %s504 = int_to_ptr.vmem [resolvable:$true] %s503
      %s505 = sshll.u32 %s2, 4
      %s506 = int_to_ptr.hbm [resolvable:$true] %s505
      %508 = dma.vmem_to_hbm [thread:$0]  %s504, 128, %s506, [#allocation8]
    $region33: #{tpu_custom_call.1} parent=1 // pred_fallthru
      _
    // Predicated region
    $region34: #{tpu_custom_call.1} parent=1 // pred_check
      _
    $region35: #{tpu_custom_call.1} parent=1 // pred_check_branch
      %510 = sbr.rel (0) target = $region37
    $region36: #{tpu_custom_call.1} parent=1 // pred_region
      %512 = dma.done [#allocation8], 128
    $region37: #{tpu_custom_call.1} parent=1 // pred_fallthru
      _
    %513 = vsyncpa [#allocation7], 1
    %514 = vsyncpa [#allocation10], 1
    %515 = vsyncpa [#allocation8], 1

</llo_original>
